<compile_context>
chip_gen: v5e
topology: v5e:2x2
jax: 0.10.0
libtpu: 0.0.40
codegen_flags: <defaults>
</compile_context>

<pallas_src>
import functools

import jax
import jax.numpy as jnp
from jax.experimental import pallas as pl
from jax.experimental.pallas import tpu as pltpu


def _round_up(x, m):
    return (x + m - 1) // m * m


def _ce_kernel(logits_ref, labels_ref, out_ref, *, ignore_label, hw, tile):
    """One (batch, pixel-tile) grid step.

    logits_ref: (1, C, tile)   classes on sublanes, pixels on lanes
    labels_ref: (1, 1, tile)   integer labels
    out_ref:    (1, 1, 2, 128) per-tile partials: row 0 = loss sum, row 1 = valid count
    """
    t = pl.program_id(1)

    x = logits_ref[0].astype(jnp.float32)      # (C, tile)
    lab = labels_ref[0].astype(jnp.int32)      # (1, tile)

    # numerically stable log-sum-exp over classes (sublane reduce); pixels stay lane-dense
    m = jnp.max(x, axis=0, keepdims=True)                                  # (1, tile)
    lse = m + jnp.log(jnp.sum(jnp.exp(x - m), axis=0, keepdims=True))      # (1, tile)

    # target-class logit via masked select (no one-hot matmul; MXU idle on purpose)
    cls_iota = jax.lax.broadcasted_iota(jnp.int32, x.shape, 0)             # (C, tile)
    x_lab = jnp.sum(jnp.where(cls_iota == lab, x, 0.0), axis=0, keepdims=True)

    # validity: not ignore_label AND inside the un-padded pixel range
    # (replaces the wrapper-side jnp.pad of logits/labels; OOB lanes hold garbage
    #  but never cross-contaminate other lanes and are zeroed here)
    pos = t * tile + jax.lax.broadcasted_iota(jnp.int32, lab.shape, 1)     # (1, tile)
    valid = (lab != ignore_label) & (pos < hw)

    loss_sum = jnp.sum(jnp.where(valid, lse - x_lab, 0.0))   # one cross-lane reduce per tile
    cnt_sum = jnp.sum(jnp.where(valid, 1.0, 0.0))

    row = jax.lax.broadcasted_iota(jnp.int32, out_ref.shape, 2)
    out_ref[...] = jnp.where(row == 0, loss_sum, cnt_sum)


def _vmem_capacity_bytes():
    """Best-effort VMEM capacity query; conservative (v7x-sized) fallback."""
    try:
        info = pltpu.get_tpu_info()
        for attr in ("vmem_capacity_bytes", "vmem_size_bytes", "vmem_bytes"):
            v = getattr(info, attr, None)
            if v:
                return int(v)
    except Exception:
        pass
    return 64 * 1024 * 1024


def cross_entropy_loss(im, lb, *, ignore_label=255):
    """Pallas equivalent of CrossEntropy.forward(im, lb).

    im: (N, C, H_im, W_im) float logits (NCHW, like PyTorch); f32 or bf16.
    lb: (N, H, W) int labels, 255 = ignore.
    returns: scalar float32 loss (mean over non-ignored pixels).
    """
    N, C, ih, iw = im.shape
    _, h, w = lb.shape
    if (ih, iw) != (h, w):
        # TODO(synk): jax.image.resize antialiases when *down*scaling, unlike
        # F.interpolate(antialias=False); identical for the usual upsample-to-label-res case.
        # TODO(synk): if the upsample path is hot, fuse the bilinear interpolation into the
        # kernel instead of materializing the full-resolution tensor in HBM.
        im = jax.image.resize(im, (N, C, h, w), method="bilinear")

    hw = h * w
    logits = im.reshape(N, C, hw)          # no transpose, no dtype copy, NO pad
    labels = lb.reshape(N, 1, hw)
    if labels.dtype not in (jnp.int8, jnp.uint8, jnp.int16, jnp.uint16, jnp.int32):
        labels = labels.astype(jnp.int32)  # narrow int dtypes pass through untouched

    # ---- generation-aware tile sizing (VMEM footprint accounts for sublane padding) ----
    itemsize = jnp.dtype(logits.dtype).itemsize
    sub = max(1, 32 // itemsize)                   # sublane tile: 8 (f32), 16 (bf16)
    padded_c = _round_up(C, sub)
    # a 1-sublane label block occupies a full sublane tile regardless of dtype -> 32 B/lane VMEM
    bytes_per_lane = padded_c * itemsize + 32

    vmem_cap = _vmem_capacity_bytes()
    if vmem_cap >= 100 * 1024 * 1024:   # v5e / v6e: 128 MiB physical VMEM
        block_budget, max_tile, vmem_limit = 8 * 1024 * 1024, 65536, 64 * 1024 * 1024
    else:                               # v7x: 64 MiB physical VMEM per TensorCore
        block_budget, max_tile, vmem_limit = 4 * 1024 * 1024, 32768, 40 * 1024 * 1024

    tile = block_budget // bytes_per_lane // 128 * 128
    tile = max(128, min(max_tile, tile))
    tile = min(tile, _round_up(hw, 128))
    n_tiles = -(-hw // tile)

    label_itemsize = jnp.dtype(labels.dtype).itemsize
    cost = pl.CostEstimate(
        flops=6 * N * n_tiles * tile * C,
        transcendentals=N * n_tiles * tile * (C + 1),
        bytes_accessed=N * hw * (C * itemsize + label_itemsize) + N * n_tiles * 2 * 128 * 4,
    )

    partials = pl.pallas_call(
        functools.partial(_ce_kernel, ignore_label=ignore_label, hw=hw, tile=tile),
        out_shape=jax.ShapeDtypeStruct((N, n_tiles, 2, 128), jnp.float32),
        grid_spec=pltpu.PrefetchScalarGridSpec(
            num_scalar_prefetch=0,
            grid=(N, n_tiles),
            in_specs=[
                pl.BlockSpec((1, C, tile), lambda n, t: (n, 0, t)),
                pl.BlockSpec((1, 1, tile), lambda n, t: (n, 0, t)),
            ],
            out_specs=pl.BlockSpec((1, 1, 2, 128), lambda n, t: (n, t, 0, 0)),
        ),
        compiler_params=pltpu.CompilerParams(
            # both axes parallel -> balanced megacore sharding on v7x even when N=1;
            # no cross-step state, so no "arbitrary" axis is needed.
            dimension_semantics=("parallel", "parallel"),
            vmem_limit_bytes=vmem_limit,
        ),
        cost_estimate=cost,
    )(logits, labels)

    total = jnp.sum(partials[:, :, 0, 0])
    count = jnp.sum(partials[:, :, 1, 0])
    # NOTE: matches PyTorch: NaN if every pixel is ignore_label.
    # NOTE: count accumulates in f32 -> exact up to ~16.7M valid pixels.
    return total / count


def _reference_loss(im, lb, ignore_label=255):
    # pure-JAX reference (matches nn.CrossEntropyLoss(ignore_index=255), mean reduction)
    N, C, ih, iw = im.shape
    _, h, w = lb.shape
    if (ih, iw) != (h, w):
        im = jax.image.resize(im, (N, C, h, w), method="bilinear")
    x = jnp.transpose(im, (0, 2, 3, 1)).reshape(-1, C).astype(jnp.float32)
    y = lb.reshape(-1).astype(jnp.int32)
    lse = jax.nn.logsumexp(x, axis=-1)
    safe_y = jnp.where(y == ignore_label, 0, y)
    x_lab = jnp.take_along_axis(x, safe_y[:, None], axis=1)[:, 0]
    valid = (y != ignore_label).astype(jnp.float32)
    return jnp.sum((lse - x_lab) * valid) / jnp.sum(valid)


if __name__ == "__main__":
    key = jax.random.PRNGKey(0)
    k_im, k_lb, k_ig, k_im2 = jax.random.split(key, 4)

    N, C, H, W = 2, 4, 16, 16
    im = jax.random.normal(k_im, (N, C, H, W), dtype=jnp.float32)
    lb = jax.random.randint(k_lb, (N, H, W), 0, C, dtype=jnp.int32)
    # sprinkle in some ignore_index=255 pixels
    ignore_mask = jax.random.bernoulli(k_ig, 0.1, (N, H, W))
    lb = jnp.where(ignore_mask, 255, lb)

    # case 1: logits already at label resolution
    loss = jax.block_until_ready(cross_entropy_loss(im, lb))
    ref = jax.block_until_ready(_reference_loss(im, lb))
    assert jnp.allclose(loss, ref, rtol=1e-5, atol=1e-5), (loss, ref)

    # case 2: logits at lower resolution -> bilinear upsample path
    im_small = jax.random.normal(k_im2, (N, C, H // 2, W // 2), dtype=jnp.float32)
    loss2 = jax.block_until_ready(cross_entropy_loss(im_small, lb))
    ref2 = jax.block_until_ready(_reference_loss(im_small, lb))
    assert jnp.allclose(loss2, ref2, rtol=1e-5, atol=1e-5), (loss2, ref2)

    print("KERNEL_OK")
</pallas_src>

<mosaic_0001>
module attributes {stable_mosaic.version = 11 : i64} {
  func.func @_ce_kernel(%arg0: i32, %arg1: i32, %arg2: memref<1x4x256xf32, #tpu.memory_space<vmem>>, %arg3: memref<1x1x256xi32, #tpu.memory_space<vmem>>, %arg4: memref<1x1x2x128xf32, #tpu.memory_space<vmem>>) attributes {dimension_semantics = [#tpu.dimension_semantics<parallel>, #tpu.dimension_semantics<parallel>], iteration_bounds = array<i64: 2, 1>, scalar_prefetch = 0 : i64, scratch_operands = 0 : i64, tpu.core_type = #tpu.core_type<tc>, window_params = [{transform_indices = @transform_0, window_bounds = array<i64: 1, 4, 256>}, {transform_indices = @transform_1, window_bounds = array<i64: 1, 1, 256>}, {transform_indices = @transform_2, window_bounds = array<i64: 1, 1, 2, 128>}]} {
    %c0 = arith.constant 0 : index
    %c0_0 = arith.constant 0 : index
    %c0_1 = arith.constant 0 : index
    %0 = vector.load %arg2[%c0, %c0_0, %c0_1] : memref<1x4x256xf32, #tpu.memory_space<vmem>>, vector<1x4x256xf32>
    %1 = vector.shape_cast %0 : vector<1x4x256xf32> to vector<4x256xf32>
    %c0_2 = arith.constant 0 : index
    %c0_3 = arith.constant 0 : index
    %c0_4 = arith.constant 0 : index
    %2 = vector.load %arg3[%c0_2, %c0_3, %c0_4] : memref<1x1x256xi32, #tpu.memory_space<vmem>>, vector<1x1x256xi32>
    %3 = vector.shape_cast %2 : vector<1x1x256xi32> to vector<1x256xi32>
    %cst = arith.constant dense<0xFF800000> : vector<256xf32>
    %4 = vector.multi_reduction <maximumf>, %1, %cst [0] : vector<4x256xf32> to vector<256xf32>
    %5 = vector.shape_cast %4 : vector<256xf32> to vector<1x256xf32>
    %6 = vector.broadcast %5 : vector<1x256xf32> to vector<4x256xf32>
    %7 = arith.subf %1, %6 : vector<4x256xf32>
    %8 = math.exp %7 : vector<4x256xf32>
    %cst_5 = arith.constant dense<0.000000e+00> : vector<256xf32>
    %9 = vector.multi_reduction <add>, %8, %cst_5 [0] : vector<4x256xf32> to vector<256xf32>
    %10 = vector.shape_cast %9 : vector<256xf32> to vector<1x256xf32>
    %11 = math.log %10 : vector<1x256xf32>
    %12 = arith.addf %5, %11 : vector<1x256xf32>
    %13 = tpu.iota {dimensions = array<i32: 0>} : vector<4x256xi32>
    %14 = vector.broadcast %3 : vector<1x256xi32> to vector<4x256xi32>
    %15 = arith.cmpi eq, %13, %14 : vector<4x256xi32>
    %cst_6 = arith.constant 0.000000e+00 : f32
    %16 = vector.broadcast %cst_6 : f32 to vector<4x256xf32>
    %17 = arith.select %15, %1, %16 : vector<4x256xi1>, vector<4x256xf32>
    %cst_7 = arith.constant dense<0.000000e+00> : vector<256xf32>
    %18 = vector.multi_reduction <add>, %17, %cst_7 [0] : vector<4x256xf32> to vector<256xf32>
    %19 = vector.shape_cast %18 : vector<256xf32> to vector<1x256xf32>
    %c256_i32 = arith.constant 256 : i32
    %20 = arith.muli %arg1, %c256_i32 : i32
    %21 = tpu.iota {dimensions = array<i32: 1>} : vector<1x256xi32>
    %22 = vector.broadcast %20 : i32 to vector<1x256xi32>
    %23 = arith.addi %22, %21 : vector<1x256xi32>
    %c255_i32 = arith.constant 255 : i32
    %24 = vector.broadcast %c255_i32 : i32 to vector<1x256xi32>
    %25 = arith.cmpi ne, %3, %24 : vector<1x256xi32>
    %c256_i32_8 = arith.constant 256 : i32
    %26 = vector.broadcast %c256_i32_8 : i32 to vector<1x256xi32>
    %27 = arith.cmpi slt, %23, %26 : vector<1x256xi32>
    %28 = arith.andi %25, %27 : vector<1x256xi1>
    %29 = arith.subf %12, %19 : vector<1x256xf32>
    %cst_9 = arith.constant 0.000000e+00 : f32
    %30 = vector.broadcast %cst_9 : f32 to vector<1x256xf32>
    %31 = arith.select %28, %29, %30 : vector<1x256xi1>, vector<1x256xf32>
    %32 = vector.shape_cast %31 : vector<1x256xf32> to vector<1x1x256xf32>
    %cst_10 = arith.constant dense<0.000000e+00> : vector<1xf32>
    %33 = vector.multi_reduction <add>, %32, %cst_10 [1, 2] : vector<1x1x256xf32> to vector<1xf32>
    %34 = vector.shape_cast %33 : vector<1xf32> to vector<1x1x1xf32>
    %35 = vector.extract %34[0, 0, 0] : f32 from vector<1x1x1xf32>
    %cst_11 = arith.constant 1.000000e+00 : f32
    %cst_12 = arith.constant 0.000000e+00 : f32
    %36 = vector.broadcast %cst_11 : f32 to vector<1x256xf32>
    %37 = vector.broadcast %cst_12 : f32 to vector<1x256xf32>
    %38 = arith.select %28, %36, %37 : vector<1x256xi1>, vector<1x256xf32>
    %39 = vector.shape_cast %38 : vector<1x256xf32> to vector<1x1x256xf32>
    %cst_13 = arith.constant dense<0.000000e+00> : vector<1xf32>
    %40 = vector.multi_reduction <add>, %39, %cst_13 [1, 2] : vector<1x1x256xf32> to vector<1xf32>
    %41 = vector.shape_cast %40 : vector<1xf32> to vector<1x1x1xf32>
    %42 = vector.extract %41[0, 0, 0] : f32 from vector<1x1x1xf32>
    %43 = tpu.iota {dimensions = array<i32: 2>} : vector<1x1x2x128xi32>
    %c0_i32 = arith.constant 0 : i32
    %44 = vector.broadcast %c0_i32 : i32 to vector<1x1x2x128xi32>
    %45 = arith.cmpi eq, %43, %44 : vector<1x1x2x128xi32>
    %46 = vector.broadcast %35 : f32 to vector<1x1x2x128xf32>
    %47 = vector.broadcast %42 : f32 to vector<1x1x2x128xf32>
    %48 = arith.select %45, %46, %47 : vector<1x1x2x128xi1>, vector<1x1x2x128xf32>
    %c0_14 = arith.constant 0 : index
    %c0_15 = arith.constant 0 : index
    %c0_16 = arith.constant 0 : index
    %c0_17 = arith.constant 0 : index
    %49 = vector.load %arg4[%c0_14, %c0_15, %c0_16, %c0_17] : memref<1x1x2x128xf32, #tpu.memory_space<vmem>>, vector<1x1x2x128xf32>
    tpu.vector_store %arg4[%c0_14, %c0_15, %c0_16, %c0_17], %48 {strides = array<i32>} : memref<1x1x2x128xf32, #tpu.memory_space<vmem>>, vector<1x1x2x128xf32>,
    return
  }
  func.func @transform_0(%arg0: i32, %arg1: i32) -> (i32, i32, i32) {
    %c0_i32 = arith.constant 0 : i32
    %c0_i32_0 = arith.constant 0 : i32
    return %arg0, %c0_i32, %arg1 : i32, i32, i32
  }
  func.func @transform_1(%arg0: i32, %arg1: i32) -> (i32, i32, i32) {
    %c0_i32 = arith.constant 0 : i32
    %c0_i32_0 = arith.constant 0 : i32
    return %arg0, %c0_i32, %arg1 : i32, i32, i32
  }
  func.func @transform_2(%arg0: i32, %arg1: i32) -> (i32, i32, i32, i32) {
    %c0_i32 = arith.constant 0 : i32
    %c0_i32_0 = arith.constant 0 : i32
    %c0_i32_1 = arith.constant 0 : i32
    return %arg0, %arg1, %c0_i32, %c0_i32_0 : i32, i32, i32, i32
  }
}

</mosaic_0001>

<llo_original>
// kernel: tpu_custom_call.1
$region0: #{tpu_custom_call.1}
  #allocation0 [shape = 'u32[]', space=smem, size = 0x4, offset = 0x4, fixed_abs, tag = 'smem constant byte address 0x4 - core index']
  #allocation1 [shape = 'u32[72,128]{1,0:T(1,128)}', space=vmem, size = 0x9000, scoped, tag = 'internal scratch']
  %s0 = inlined_call_operand.hbm [shape: f32[2,4,256], index: 0, kind: input, shape index: {}]
  %s1 = inlined_call_operand.hbm [shape: s32[2,1,256], index: 1, kind: input, shape index: {}]
  %s2 = inlined_call_operand.hbm [shape: f32[2,1,2,128], index: 2, kind: output, shape index: {}]
  %s3 = sld [smem:[#allocation0]]
  $region49: #{tpu_custom_call.1} parent=0
    _
  %s5 = ssub.s32 1, %s3
  %s6 = scalar_select 0, %s5, %s3
  $region1: #{tpu_custom_call.1} parent=0
    #allocation2 [shape = 'u8[8192]{0}', space=vmem, size = 0x2000, scoped, tag = 'input window, operand 0']
    #allocation3 [shape = 's32[2]{0}', space=sflag, size = 0x8, scoped, tag = 'scoped memory for tpu_custom_call.1']
    #allocation4 [shape = 's32[2]{0}', space=sflag, size = 0x8, scoped, tag = 'scoped memory for tpu_custom_call.1']
    #allocation5 [shape = 'u8[2048]{0}', space=vmem, size = 0x800, scoped, tag = 'input window, operand 1']
    #allocation6 [shape = 's32[2]{0}', space=sflag, size = 0x8, scoped, tag = 'scoped memory for tpu_custom_call.1']
    #allocation7 [shape = 'u8[2048]{0}', space=vmem, size = 0x800, scoped, tag = 'output window, operand 0']
    %7 = vsyncpa [#allocation3], 0
    %s8 = scalar_lea.sflag [#allocation3], 1
    %9 = vsyncpa %s8, 0
    %10 = vsyncpa [#allocation6], 0
    %s11 = scalar_lea.sflag [#allocation6], 1
    %12 = vsyncpa %s11, 0
    %13 = vsyncpa [#allocation4], 0
    %s14 = scalar_lea.sflag [#allocation4], 1
    %15 = vsyncpa %s14, 0
    loop: start=0, step=1, limit=4
    $region2: #{tpu_custom_call.1} parent=1 // loop_pre_header
      _
    $region3: #{tpu_custom_call.1} parent=1 // loop_header
      %s17 = sphi 0, %s21
      %p18 = scmp.ge.s32.totalorder %s17, 4
      %s24 = sphi 0, %s36
      %s25 = sphi 0, %s32
      %s26 = sphi 0, %s24
      %s27 = sphi 0, %s25
      %s28 = sphi 0, %s26
      %s29 = sphi 0, %s27
      %s41 = sphi 0, %s43
      %s44 = sphi 0, %s41
      %s45 = sphi 0, %s44
      %s61 = sphi 0, %s45
      %s69 = sphi 0, %s71
      %s72 = sphi 0, %s69
      %s73 = sphi 0, %s72
      %s89 = sphi 0, %s73
      %s97 = sphi 0, %s99
      %s100 = sphi 0, %s97
      %s101 = sphi 0, %s100
      %s117 = sphi 0, %s101
    $region4: #{tpu_custom_call.1} parent=1 // loop_header_branch
      %20 = sbr.rel (%p18) target = $region8
    $region5: #{tpu_custom_call.1} parent=1 // loop_body
      %s22 = ssub.s32 %s17, 1
      %s23 = ssub.s32 %s17, 2
      %s30 = sadd.s32 1, %s25
      %p31 = scmp.ge.s32.totalorder %s30, 1
      %s32 = scalar_select %p31, 0, %s30
      %s33 = sadd.s32 1, %s24
      %s34 = scalar_select %p31, %s33, %s24
      %p35 = scmp.ge.s32.totalorder %s34, 2
      %s36 = scalar_select %p35, 0, %s34
      %s37 = ssub.s32 %s24, %s36
      %s38 = ssub.s32 %s25, %s32
      %s39 = sor.u32 %s37, %s38
      %p40 = scmp.eq.s32.totalorder %s39, 0
      %s42 = sadd.s32 %s41, 1
      %s43 = scalar_select %p40, %s41, %s42
      %p46 = pneg %p40
      %p47 = scmp.eq.s32.totalorder %s17, 1
      %p48 = por %p46, %p47
      %p49 = scmp.ne.s32.totalorder %s41, %s44
      %p50 = scmp.eq.s32.totalorder %s17, 0
      %p51 = por %p49, %p50
      %p52 = scmp.ne.s32.totalorder %s41, %s44
      %p53 = scmp.eq.s32.totalorder %s22, 1
      %p54 = por %p52, %p53
      %p55 = scmp.ne.s32.totalorder %s44, %s45
      %p56 = scmp.eq.s32.totalorder %s22, 0
      %p57 = por %p55, %p56
      %p58 = scmp.ne.s32.totalorder %s44, %s45
      %p59 = scmp.eq.s32.totalorder %s23, 1
      %p60 = por %p58, %p59
      %p62 = scmp.ne.s32.totalorder %s45, %s61
      %p63 = scmp.eq.s32.totalorder %s23, 0
      %p64 = por %p62, %p63
      %s65 = ssub.s32 %s24, %s36
      %s66 = ssub.s32 %s25, %s32
      %s67 = sor.u32 %s65, %s66
      %p68 = scmp.eq.s32.totalorder %s67, 0
      %s70 = sadd.s32 %s69, 1
      %s71 = scalar_select %p68, %s69, %s70
      %p74 = pneg %p68
      %p75 = scmp.eq.s32.totalorder %s17, 1
      %p76 = por %p74, %p75
      %p77 = scmp.ne.s32.totalorder %s69, %s72
      %p78 = scmp.eq.s32.totalorder %s17, 0
      %p79 = por %p77, %p78
      %p80 = scmp.ne.s32.totalorder %s69, %s72
      %p81 = scmp.eq.s32.totalorder %s22, 1
      %p82 = por %p80, %p81
      %p83 = scmp.ne.s32.totalorder %s72, %s73
      %p84 = scmp.eq.s32.totalorder %s22, 0
      %p85 = por %p83, %p84
      %p86 = scmp.ne.s32.totalorder %s72, %s73
      %p87 = scmp.eq.s32.totalorder %s23, 1
      %p88 = por %p86, %p87
      %p90 = scmp.ne.s32.totalorder %s73, %s89
      %p91 = scmp.eq.s32.totalorder %s23, 0
      %p92 = por %p90, %p91
      %s93 = ssub.s32 %s24, %s36
      %s94 = ssub.s32 %s25, %s32
      %s95 = sor.u32 %s93, %s94
      %p96 = scmp.eq.s32.totalorder %s95, 0
      %s98 = sadd.s32 %s97, 1
      %s99 = scalar_select %p96, %s97, %s98
      %p102 = pneg %p96
      %p103 = scmp.eq.s32.totalorder %s17, 1
      %p104 = por %p102, %p103
      %p105 = scmp.ne.s32.totalorder %s97, %s100
      %p106 = scmp.eq.s32.totalorder %s17, 0
      %p107 = por %p105, %p106
      %p108 = scmp.ne.s32.totalorder %s97, %s100
      %p109 = scmp.eq.s32.totalorder %s22, 1
      %p110 = por %p108, %p109
      %p111 = scmp.ne.s32.totalorder %s100, %s101
      %p112 = scmp.eq.s32.totalorder %s22, 0
      %p113 = por %p111, %p112
      %p114 = scmp.ne.s32.totalorder %s100, %s101
      %p115 = scmp.eq.s32.totalorder %s23, 1
      %p116 = por %p114, %p115
      %p118 = scmp.ne.s32.totalorder %s101, %s117
      %p119 = scmp.eq.s32.totalorder %s23, 0
      %p120 = por %p118, %p119
      %p121 = scmp.le.s32.totalorder 1, %s17
      %p122 = scmp.lt.s32.totalorder %s17, 3
      %p123 = pnand %p121, %p122
      %p124 = pneg %p123
      // Predicated region
      $region9: #{tpu_custom_call.1} parent=5 // pred_check
        _
      $region10: #{tpu_custom_call.1} parent=5 // pred_check_branch
        %126 = sbr.rel (%p123) target = $region12
      $region11: #{tpu_custom_call.1} parent=5 // pred_region
        %s127 = ssub.s32 %s17, 1
      $region12: #{tpu_custom_call.1} parent=5 // pred_fallthru
        _
      %p128 = scmp.lt.s32.totalorder %s17, 2
      // Predicated region
      $region13: #{tpu_custom_call.1} parent=5 // pred_check
        %p129 = pneg %p128
      $region14: #{tpu_custom_call.1} parent=5 // pred_check_branch
        %131 = sbr.rel (%p129) target = $region16
      $region15: #{tpu_custom_call.1} parent=5 // pred_region
        // Predicated region
        $region17: #{tpu_custom_call.1} parent=15 // pred_check
          %p132 = pneg %p51
        $region18: #{tpu_custom_call.1} parent=15 // pred_check_branch
          %134 = sbr.rel (%p132) target = $region20
        $region19: #{tpu_custom_call.1} parent=15 // pred_region
          %s135 = sand.u32 %s41, 1
          %s136 = scalar_lea.sflag [#allocation3], %s135
          %s137 = sand.u32 %s41, 1
          %s138 = smul.addr %s137, 8
          %s139 = scalar_lea.vmem [#allocation2], %s138
          %s140 = smul.u32 2, %s25
          %142 = vsyncadd %s136, 0
          %s143 = smul.addr %s24, 2
          %s144 = sadd.s32 %s140, %s143
          %s145 = smul.addr %s144, 4
          %s146 = scalar_lea.hbm %s0, %s145
          %s148 = sshll.u32 %s146, 4
          %s149 = int_to_ptr.hbm [resolvable:$true] %s148
          %s150 = sshll.u32 %s139, 4
          %s151 = int_to_ptr.vmem [resolvable:$true] %s150
          %153 = dma.hbm_to_vmem [thread:$0]  %s149, 128, %s151, %s136
        $region20: #{tpu_custom_call.1} parent=15 // pred_fallthru
          _
        // Predicated region
        $region21: #{tpu_custom_call.1} parent=15 // pred_check
          %p154 = pneg %p79
        $region22: #{tpu_custom_call.1} parent=15 // pred_check_branch
          %156 = sbr.rel (%p154) target = $region24
        $region23: #{tpu_custom_call.1} parent=15 // pred_region
          %s157 = sand.u32 %s69, 1
          %s158 = scalar_lea.sflag [#allocation6], %s157
          %s159 = sand.u32 %s69, 1
          %s160 = smul.addr %s159, 2
          %s161 = scalar_lea.vmem [#allocation5], %s160
          %s162 = smul.u32 2, %s25
          %164 = vsyncadd %s158, 0
          %s165 = smul.addr %s24, 2
          %s166 = sadd.s32 %s162, %s165
          %s167 = scalar_lea.hbm %s1, %s166
          %s169 = sshll.u32 %s167, 4
          %s170 = int_to_ptr.hbm [resolvable:$true] %s169
          %s171 = sshll.u32 %s161, 4
          %s172 = int_to_ptr.vmem [resolvable:$true] %s171
          %174 = dma.hbm_to_vmem [thread:$0]  %s170, 32, %s172, %s158
        $region24: #{tpu_custom_call.1} parent=15 // pred_fallthru
          _
      $region16: #{tpu_custom_call.1} parent=5 // pred_fallthru
        _
      %p175 = scmp.le.s32.totalorder 1, %s17
      %p176 = scmp.lt.s32.totalorder %s17, 3
      %p177 = pnand %p175, %p176
      %p178 = pneg %p177
      // Predicated region
      $region25: #{tpu_custom_call.1} parent=5 // pred_check
        _
      $region26: #{tpu_custom_call.1} parent=5 // pred_check_branch
        %180 = sbr.rel (%p177) target = $region28
      $region27: #{tpu_custom_call.1} parent=5 // pred_region
        %s181 = ssub.s32 %s17, 1
        %s182 = sand.u32 %s44, 1
        %s183 = scalar_lea.sflag [#allocation3], %s182
        %s184 = sand.u32 %s44, 1
        %s185 = smul.addr %s184, 8
        %s186 = scalar_lea.vmem [#allocation2], %s185
        // Predicated region
        $region29: #{tpu_custom_call.1} parent=27 // pred_check
          %p187 = pneg %p57
        $region30: #{tpu_custom_call.1} parent=27 // pred_check_branch
          %189 = sbr.rel (%p187) target = $region32
        $region31: #{tpu_custom_call.1} parent=27 // pred_region
          %191 = dma.done %s183, 128
        $region32: #{tpu_custom_call.1} parent=27 // pred_fallthru
          _
        %s192 = sand.u32 %s72, 1
        %s193 = scalar_lea.sflag [#allocation6], %s192
        %s194 = sand.u32 %s72, 1
        %s195 = smul.addr %s194, 2
        %s196 = scalar_lea.vmem [#allocation5], %s195
        // Predicated region
        $region33: #{tpu_custom_call.1} parent=27 // pred_check
          %p197 = pneg %p85
        $region34: #{tpu_custom_call.1} parent=27 // pred_check_branch
          %199 = sbr.rel (%p197) target = $region36
        $region35: #{tpu_custom_call.1} parent=27 // pred_region
          %201 = dma.done %s193, 32
        $region36: #{tpu_custom_call.1} parent=27 // pred_fallthru
          _
        %s202 = sand.u32 %s44, 1
        %s203 = scalar_lea.sflag [#allocation3], %s202
        %s204 = sand.u32 %s44, 1
        %s205 = smul.addr %s204, 8
        %s206 = scalar_lea.vmem [#allocation2], %s205
        %p207 = pneg %p57
        %p208 = pneg %p54
        %s209 = sand.u32 %s72, 1
        %s210 = scalar_lea.sflag [#allocation6], %s209
        %s211 = sand.u32 %s72, 1
        %s212 = smul.addr %s211, 2
        %s213 = scalar_lea.vmem [#allocation5], %s212
        %p214 = pneg %p85
        %p215 = pneg %p82
        %p216 = pneg %p113
        %p217 = pneg %p110
        %s218 = sand.u32 %s100, 1
        %s219 = scalar_lea.sflag [#allocation4], %s218
        %s220 = sand.u32 %s100, 1
        %s221 = smul.addr %s220, 2
        %s222 = scalar_lea.vmem [#allocation7], %s221
        %s223 = smul.u32 2, %s27
        %s224 = smul.u32 2, %s27
        %v225 = vld [vmem:[%s186] sm:$0xff]
        %v226 = vld [vmem:[%s196] sm:$0x3]
        %228 = vst [vmem:[#allocation1] ss:$2 sm:$0xff] %v225
        %v229 = vld.sshfl [vmem:[#allocation1] sm:$0xff pattern:$0x75316420]
        %v230 = vld.sshfl [vmem:[#allocation1 + $0x8] sm:$0xff pattern:$0x75316420]
        %vm233 = vcmask 1043456
        %v234 = vsel %vm233, %v229, -inf
        %v235 = vrot.slane %v234, 4
        %v236 = vmax.f32 %v234, %v235
        %v237 = vrot.slane %v236, 2
        %v238 = vmax.f32 %v236, %v237
        %v239 = vrot.slane %v238, 1
        %v240 = vmax.f32 %v238, %v239
        %v241 = vsel %vm233, %v230, -inf
        %v242 = vrot.slane %v241, 4
        %v243 = vmax.f32 %v241, %v242
        %v244 = vrot.slane %v243, 2
        %v245 = vmax.f32 %v243, %v244
        %v246 = vrot.slane %v245, 1
        %v247 = vmax.f32 %v245, %v246
        %v250 = vrot.slane %v247, 4
        %v251 = vsel %vm233, %v240, %v250
        %v253 = vsub.f32 %v225, %v251
        %v254 = vmul.f32 %v253, 1.442695
        %v255 = vpow.pop %v254
        %257 = vst [vmem:[#allocation1] ss:$2 sm:$0xff] %v255
        %v258 = vld.sshfl [vmem:[#allocation1] sm:$0xff pattern:$0x75316420]
        %v259 = vld.sshfl [vmem:[#allocation1 + $0x8] sm:$0xff pattern:$0x75316420]
        %v262 = vsel %vm233, %v258, 0.0
        %v263 = vrot.slane %v262, 4
        %v264 = vadd.f32 %v262, %v263
        %v265 = vrot.slane %v264, 2
        %v266 = vadd.f32 %v264, %v265
        %v267 = vrot.slane %v266, 1
        %v268 = vadd.f32 %v266, %v267
        %v269 = vsel %vm233, %v259, 0.0
        %v270 = vrot.slane %v269, 4
        %v271 = vadd.f32 %v269, %v270
        %v272 = vrot.slane %v271, 2
        %v273 = vadd.f32 %v271, %v272
        %v274 = vrot.slane %v273, 1
        %v275 = vadd.f32 %v273, %v274
        %v276 = vlog2.pop %v268
        %v277 = vmul.f32 %v276, 0.6931472
        %v278 = vlog2.pop %v275
        %v279 = vmul.f32 %v278, 0.6931472
        %v280 = vadd.f32 %v240, %v277
        %v281 = vadd.f32 %v247, %v279
        %v282 = vlaneseq
        %v283 = vshrl.u32 %v282, 7
        %v284 = vperm.slane %v226, 0
        %v285 = vperm.slane %v226, 1
        %vm286 = vcmp.eq.s32.totalorder %v283, %v284
        %vm287 = vcmp.eq.s32.totalorder %v283, %v285
        %288 = vst [vmem:[#allocation1] ss:$2 sm:$0xff] %v225
        %v289 = vld.sshfl [vmem:[#allocation1] sm:$0xff pattern:$0x75316420]
        %v290 = vld.sshfl [vmem:[#allocation1 + $0x8] sm:$0xff pattern:$0x75316420]
        %v293 = vsel %vm286, %v289, 0.0
        %v294 = vsel %vm287, %v290, 0.0
        %v295 = vsel %vm233, %v293, 0.0
        %v296 = vrot.slane %v295, 4
        %v297 = vadd.f32 %v295, %v296
        %v298 = vrot.slane %v297, 2
        %v299 = vadd.f32 %v297, %v298
        %v300 = vrot.slane %v299, 1
        %v301 = vadd.f32 %v299, %v300
        %v302 = vsel %vm233, %v294, 0.0
        %v303 = vrot.slane %v302, 4
        %v304 = vadd.f32 %v302, %v303
        %v305 = vrot.slane %v304, 2
        %v306 = vadd.f32 %v304, %v305
        %v307 = vrot.slane %v306, 1
        %v308 = vadd.f32 %v306, %v307
        %s309 = smul.u32 %s27, 256
        %v310 = vlaneseq
        %v311 = vand.u32 %v310, 127
        %v312 = vadd.s32 %v311, 128
        %v313 = vstv %s309
        %v314 = vadd.s32 %v313, %v311
        %v315 = vadd.s32 %v313, %v312
        %vm316 = vcmp.ne.s32.totalorder %v226, 255
        %vm317 = vcmp.lt.s32.totalorder %v314, 256
        %vm318 = vcmp.lt.s32.totalorder %v315, 256
        %v319 = vsel %vm317, 1, 0
        %v320 = vsel %vm318, 1, 0
        %v321 = vrot.slane %v320, 7
        %vm322 = vcmask 1040384
        %v323 = vsel %vm322, %v319, %v321
        %vm324 = vcmp.ne.s32.totalorder %v323, 0
        %vm325 = vmand %vm316, %vm324
        %v326 = vsub.f32 %v280, %v301
        %v327 = vsub.f32 %v281, %v308
        %v330 = vrot.slane %v327, 7
        %v331 = vsel %vm322, %v326, %v330
        %v333 = vsel %vm325, %v331, 0.0
        %v335 = vperm.slane %v333, 0
        %v336 = vperm.slane %v333, 1
        %v339 = vsel %vm322, %v335, 0.0
        %v340 = vsel %vm322, %v336, 0.0
        %v341 = vadd.f32 %v339, %v340
        %342 = vadd.xlane.f32.xlu0 %v341
        %v343 = vpop.xlane.xlu0 %342
        %v344 = vrot.slane %v343, 4
        %v345 = vadd.f32 %v343, %v344
        %v346 = vrot.slane %v345, 2
        %v347 = vadd.f32 %v345, %v346
        %v348 = vrot.slane %v347, 1
        %v349 = vadd.f32 %v347, %v348
        %s350 = vtos %v349
        %v351 = vsel %vm325, 1.0, 0.0
        %v353 = vperm.slane %v351, 0
        %v354 = vperm.slane %v351, 1
        %v357 = vsel %vm322, %v353, 0.0
        %v358 = vsel %vm322, %v354, 0.0
        %v359 = vadd.f32 %v357, %v358
        %360 = vadd.xlane.f32.xlu0 %v359
        %v361 = vpop.xlane.xlu0 %360
        %v362 = vrot.slane %v361, 4
        %v363 = vadd.f32 %v361, %v362
        %v364 = vrot.slane %v363, 2
        %v365 = vadd.f32 %v363, %v364
        %v366 = vrot.slane %v365, 1
        %v367 = vadd.f32 %v365, %v366
        %s368 = vtos %v367
        %vm369 = vcmp.eq.s32.totalorder %v283, 0
        %v370 = vstv %s350
        %v371 = vstv %s368
        %v372 = vsel %vm369, %v370, %v371
        %373 = vst [vmem:[%s222] sm:$0x3] %v372
        %s374 = sand.u32 %s100, 1
        %s375 = scalar_lea.sflag [#allocation4], %s374
        %s376 = sand.u32 %s100, 1
        %s377 = smul.addr %s376, 2
        %s378 = scalar_lea.vmem [#allocation7], %s377
        // Predicated region
        $region37: #{tpu_custom_call.1} parent=27 // pred_check
          %p379 = pneg %p110
        $region38: #{tpu_custom_call.1} parent=27 // pred_check_branch
          %381 = sbr.rel (%p379) target = $region40
        $region39: #{tpu_custom_call.1} parent=27 // pred_region
          %383 = vsyncadd %s375, 0
          %s384 = sadd.s32 %s27, %s26
          %s385 = smul.addr %s384, 2
          %s386 = scalar_lea.hbm %s2, %s385
          %s388 = sshll.u32 %s378, 4
          %s389 = int_to_ptr.vmem [resolvable:$true] %s388
          %s390 = sshll.u32 %s386, 4
          %s391 = int_to_ptr.hbm [resolvable:$true] %s390
          %393 = dma.vmem_to_hbm [thread:$0]  %s389, 32, %s391, %s375
        $region40: #{tpu_custom_call.1} parent=27 // pred_fallthru
          _
      $region28: #{tpu_custom_call.1} parent=5 // pred_fallthru
        _
      %p394 = scmp.le.s32.totalorder 2, %s17
      // Predicated region
      $region41: #{tpu_custom_call.1} parent=5 // pred_check
        %p395 = pneg %p394
      $region42: #{tpu_custom_call.1} parent=5 // pred_check_branch
        %397 = sbr.rel (%p395) target = $region44
      $region43: #{tpu_custom_call.1} parent=5 // pred_region
        %s398 = ssub.s32 %s17, 2
        // Predicated region
        $region45: #{tpu_custom_call.1} parent=43 // pred_check
          %p399 = pneg %p116
        $region46: #{tpu_custom_call.1} parent=43 // pred_check_branch
          %401 = sbr.rel (%p399) target = $region48
        $region47: #{tpu_custom_call.1} parent=43 // pred_region
          %s402 = sand.u32 %s101, 1
          %s403 = scalar_lea.sflag [#allocation4], %s402
          %s404 = sand.u32 %s101, 1
          %s405 = smul.addr %s404, 2
          %s406 = scalar_lea.vmem [#allocation7], %s405
          %408 = dma.done %s403, 32
        $region48: #{tpu_custom_call.1} parent=43 // pred_fallthru
          _
      $region44: #{tpu_custom_call.1} parent=5 // pred_fallthru
        _
    $region6: #{tpu_custom_call.1} parent=1 // loop_footer
      %s21 = sadd.s32 1, %s17
    $region7: #{tpu_custom_call.1} parent=1 // loop_footer_branch
      %16 = sbr.rel target = $region3
    $region8: #{tpu_custom_call.1} parent=1 // loop_exit
      _
    %409 = vsyncpa [#allocation3], 1
    %s410 = scalar_lea.sflag [#allocation3], 1
    %411 = vsyncpa %s410, 1
    %412 = vsyncpa [#allocation6], 1
    %s413 = scalar_lea.sflag [#allocation6], 1
    %414 = vsyncpa %s413, 1
    %415 = vsyncpa [#allocation4], 1
    %s416 = scalar_lea.sflag [#allocation4], 1
    %417 = vsyncpa %s416, 1

</llo_original>
